<compile_context>
chip_gen: v6e
topology: v6e:2x2x1
jax: 0.10.0
libtpu: 0.0.40
codegen_flags: <defaults>
</compile_context>

<pallas_src>
import jax
import jax.numpy as jnp
from jax.experimental import pallas as pl
from jax.experimental.pallas import tpu as pltpu


def _bgr2rgb_u8_kernel(mask_c0_ref, mask_c2_ref, x_ref, o_ref):
    """One (tile_rows, W*3) block: interleaved BGR -> RGB, stored as uint8.

    mask_c0 / mask_c2: (1, W*3) uint8 rows marking output lanes whose channel
    index (lane % 3) is 0 / 2.  out[.., 3w + c] = in[.., 3w + (2 - c)]:
        c == 0 -> in[j + 2]   (forward lane roll)
        c == 1 -> in[j]
        c == 2 -> in[j - 2]   (backward lane roll)
    """
    x = x_ref[...]
    if jnp.issubdtype(x.dtype, jnp.floating):
        # numpy's astype(np.uint8) truncates toward zero for in-range [0, 255]
        # values; float -> int32 -> uint8 matches that exactly in-range.
        # (Out-of-range / negative pixels are implementation-defined in the
        # CPU reference as well; inputs are assumed to be valid pixel values.)
        x = x.astype(jnp.int32)
    vals = x if x.dtype == jnp.uint8 else x.astype(jnp.uint8)   # (rows, lanes) u8

    take_fwd = mask_c0_ref[...] != 0          # (1, lanes) bool: output R lanes
    take_bwd = mask_c2_ref[...] != 0          # (1, lanes) bool: output B lanes

    rows, lanes = vals.shape
    if rows % 4 == 0:
        # Fast path: pack 4 uint8 rows per uint32 word (pltpu.bitcast packs
        # along the sublane dim, so all 4 bytes of a word live in the same lane
        # and share the same channel index).  Rolls, mask broadcasts and
        # selects then touch 4x fewer 32-bit vregs than an int32 formulation.
        packed = pltpu.bitcast(vals, jnp.uint32)            # (rows // 4, lanes)
        if lanes % 128 == 0:
            # Lane-aligned widths (640/1280/1920-wide video): guaranteed XLU
            # lane rotation (free slot vs. the VPU).
            fwd = pltpu.roll(packed, lanes - 2, axis=1)     # word[j + 2]
            bwd = pltpu.roll(packed, 2, axis=1)             # word[j - 2]
        else:
            fwd = jnp.roll(packed, -2, axis=1)
            bwd = jnp.roll(packed, 2, axis=1)
        # Rotation wrap-around lanes are never selected: c==0 never occurs in
        # the last two lanes, c==2 never in the first two.
        rgb = jnp.where(take_fwd, fwd, jnp.where(take_bwd, bwd, packed))
        o_ref[...] = pltpu.bitcast(rgb, jnp.uint8)
    else:
        # Rare tiny / odd row counts: plain 32-bit formulation (correct, just
        # not packed).  Production video shapes never take this branch.
        v32 = vals.astype(jnp.int32)
        fwd = jnp.roll(v32, -2, axis=1)
        bwd = jnp.roll(v32, 2, axis=1)
        rgb = jnp.where(take_fwd, fwd, jnp.where(take_bwd, bwd, v32))
        o_ref[...] = rgb.astype(jnp.uint8)


def _pick_tile_rows(total_rows, lanes, in_itemsize):
    """Rows per block, sized against the per-generation VMEM capacity.

    Per-grid-step overhead is ~0.35 us, so blocks are made large.  The budget
    below only counts the double-buffered input + uint8 output blocks; the
    kernel's tile-sized temporaries (the int32 convert for float input, the two
    rolled copies, selects) take roughly another input-block's worth of VMEM,
    which is why the budget is capped at ~1/3 of physical VMEM (v7x has only
    64 MiB physical vs. 128 MiB on v5e/v6e).  Rows stay a multiple of 32 so the
    uint8 output tile keeps its (32, 128) min-tile alignment.
    """
    per_row = 2 * lanes * (in_itemsize + 1)        # 2 bufs * (input dtype + u8 out)
    try:
        vmem_cap = int(pltpu.get_tpu_info().vmem_capacity_bytes)
    except Exception:
        vmem_cap = 64 << 20                        # v7x physical = smallest generation
    budget = max(8 << 20, min(32 << 20, vmem_cap // 3))
    rows = (budget // max(per_row, 1)) // 32 * 32
    rows = max(32, min(rows, 1024))
    if total_rows <= rows:
        return total_rows, vmem_cap                # single full-extent block
    return rows, vmem_cap


def bgr_to_rgb_uint8(frames):
    """(T, H, W, 3) BGR frames (float or int, values in [0, 255]) ->
    (T, H, W, 3) RGB uint8 — the cv2.cvtColor(image.astype(np.uint8), BGR2RGB)
    result for every frame, in the reference HWC layout.

    Widths with W*3 % 128 == 0 (640/1280/1920-wide video) keep the output
    stores unmasked / lane-dense; other widths still work via the full-extent
    lane block (the last-dim-equals-array-dim exemption).
    """
    assert frames.ndim == 4
    t, h, w, ch = frames.shape
    assert ch == 3
    lanes = w * ch
    total_rows = t * h
    # Free view of the contiguous NHWC buffer: blocks may span frame boundaries.
    x2d = frames.reshape(total_rows, lanes)

    tile_rows, vmem_cap = _pick_tile_rows(total_rows, lanes, frames.dtype.itemsize)
    grid = (pl.cdiv(total_rows, tile_rows),)

    # Precomputed per-lane channel masks (c == 0 / c == 2) as tiny uint8 rows.
    chan = jnp.tile(jnp.arange(ch, dtype=jnp.int32), w)
    mask_c0 = (chan == 0).astype(jnp.uint8).reshape(1, lanes)
    mask_c2 = (chan == 2).astype(jnp.uint8).reshape(1, lanes)

    in_bytes = total_rows * lanes * frames.dtype.itemsize
    out_bytes = total_rows * lanes                 # uint8 output
    working_set = 2 * tile_rows * lanes * (frames.dtype.itemsize + 1)
    # Explicit scoped-VMEM limit: generous headroom over the pipeline buffers
    # for in-kernel temporaries, but always below physical capacity.
    vmem_limit = int(min(max(32 << 20, working_set + (16 << 20)),
                         max(vmem_cap - (8 << 20), 32 << 20)))

    out = pl.pallas_call(
        _bgr2rgb_u8_kernel,
        out_shape=jax.ShapeDtypeStruct((total_rows, lanes), jnp.uint8),
        grid=grid,
        in_specs=[
            pl.BlockSpec((1, lanes), lambda r: (0, 0)),           # mask c == 0
            pl.BlockSpec((1, lanes), lambda r: (0, 0)),           # mask c == 2
            pl.BlockSpec((tile_rows, lanes), lambda r: (r, 0)),   # frame rows
        ],
        out_specs=pl.BlockSpec((tile_rows, lanes), lambda r: (r, 0)),
        compiler_params=pltpu.CompilerParams(
            # Row blocks are independent -> megacore-shardable on v7x (2 TCs).
            # TODO(synk): switch to pltpu.CORE_PARALLEL on the row axis if
            # profiling ever shows a single TensorCore active on v7x.
            dimension_semantics=("parallel",),
            vmem_limit_bytes=vmem_limit,
        ),
        cost_estimate=pl.CostEstimate(
            flops=0, transcendentals=0, bytes_accessed=int(in_bytes + out_bytes)),
    )(mask_c0, mask_c2, x2d)
    return out.reshape(t, h, w, ch)


def face_detect_forward(frames):
    """JAX/Pallas equivalent of FaceDetect.forward.

    frames: (B, T, H, W, 3) or (T, H, W, 3), BGR, pixel values in [0, 255].
    Returns (bboxes_per_frame, rgb_uint8_frames) where rgb_uint8_frames is the
    (T, H, W, 3) uint8 RGB clip fed to the detector in the reference.
    """
    if frames.ndim == 5:
        # Matches the reference: `frames = frames[0, :]` (only batch element 0).
        frames = frames[0]
    t, h, w, ch = frames.shape
    assert ch == 3

    rgb_u8 = bgr_to_rgb_uint8(frames)

    # TODO(synk): the MediaPipe BlazeFace detector (model_selection=1) is an
    # external opaque model with no weights in this module; emit the module's
    # documented "no detection" fallback bbox per frame (a Python constant —
    # no kernel launch, no device round-trip).
    bboxes_per_frame = [{"xmin": 0, "ymin": 0, "w": w, "h": h} for _ in range(t)]
    return bboxes_per_frame, rgb_u8


if __name__ == "__main__":
    key = jax.random.PRNGKey(0)
    k1, k2 = jax.random.split(key)

    # Primary check: float32 BGR clip with a lane-aligned width (W*3 = 384) and
    # a batch dim: (B=2, T=4, H=32, W=128, C=3).  Exercises the packed-uint32
    # fast path with pltpu.roll and the float -> uint8 truncating cast.
    frames_f32 = jax.random.uniform(
        k1, (2, 4, 32, 128, 3), minval=0.0, maxval=255.0, dtype=jnp.float32)
    bboxes, rgb_u8 = face_detect_forward(frames_f32)
    jax.block_until_ready(rgb_u8)
    assert rgb_u8.dtype == jnp.uint8 and rgb_u8.shape == (4, 32, 128, 3)
    ref = frames_f32[0][..., ::-1].astype(jnp.int32).astype(jnp.uint8)
    assert bool(jnp.all(rgb_u8 == ref))
    assert len(bboxes) == 4
    assert bboxes[0] == {"xmin": 0, "ymin": 0, "w": 128, "h": 32}

    # Secondary check: uint8 input (no in-kernel converts, 1 B/px read) at an
    # unaligned width (W*3 = 48), exercising the jnp.roll branch of the packed
    # path and the 4-D (no batch) input handling: (T=8, H=16, W=16, C=3).
    frames_u8 = jax.random.randint(
        k2, (8, 16, 16, 3), 0, 256, dtype=jnp.int32).astype(jnp.uint8)
    bboxes2, rgb2 = face_detect_forward(frames_u8)
    jax.block_until_ready(rgb2)
    assert rgb2.dtype == jnp.uint8 and rgb2.shape == (8, 16, 16, 3)
    ref2 = frames_u8[..., ::-1]
    assert bool(jnp.all(rgb2 == ref2))
    assert len(bboxes2) == 8
    assert bboxes2[0] == {"xmin": 0, "ymin": 0, "w": 16, "h": 16}

    print("KERNEL_OK")
</pallas_src>

<mosaic_0001>
module attributes {stable_mosaic.version = 11 : i64} {
  func.func @_bgr2rgb_u8_kernel(%arg0: i32, %arg1: memref<1x384xi8, #tpu.memory_space<vmem>>, %arg2: memref<1x384xi8, #tpu.memory_space<vmem>>, %arg3: memref<128x384xf32, #tpu.memory_space<vmem>>, %arg4: memref<128x384xi8, #tpu.memory_space<vmem>>) attributes {dimension_semantics = [#tpu.dimension_semantics<parallel>], iteration_bounds = array<i64: 1>, scalar_prefetch = 0 : i64, scratch_operands = 0 : i64, tpu.core_type = #tpu.core_type<tc>, window_params = [{pipeline_mode = #tpu.pipeline_mode<synchronous>, transform_indices = @transform_0, window_bounds = array<i64: 1, 384>}, {pipeline_mode = #tpu.pipeline_mode<synchronous>, transform_indices = @transform_1, window_bounds = array<i64: 1, 384>}, {transform_indices = @transform_2, window_bounds = array<i64: 128, 384>}, {transform_indices = @transform_3, window_bounds = array<i64: 128, 384>}]} {
    %c0 = arith.constant 0 : index
    %c0_0 = arith.constant 0 : index
    %0 = vector.load %arg3[%c0, %c0_0] : memref<128x384xf32, #tpu.memory_space<vmem>>, vector<128x384xf32>
    %1 = arith.fptosi %0 : vector<128x384xf32> to vector<128x384xi32>
    %2 = arith.trunci %1 : vector<128x384xi32> to vector<128x384xi8>
    %c0_1 = arith.constant 0 : index
    %c0_2 = arith.constant 0 : index
    %3 = vector.load %arg1[%c0_1, %c0_2] : memref<1x384xi8, #tpu.memory_space<vmem>>, vector<1x384xi8>
    %c0_i8 = arith.constant 0 : i8
    %4 = vector.broadcast %c0_i8 : i8 to vector<1x384xi8>
    %5 = arith.cmpi ne, %3, %4 : vector<1x384xi8>
    %c0_3 = arith.constant 0 : index
    %c0_4 = arith.constant 0 : index
    %6 = vector.load %arg2[%c0_3, %c0_4] : memref<1x384xi8, #tpu.memory_space<vmem>>, vector<1x384xi8>
    %c0_i8_5 = arith.constant 0 : i8
    %7 = vector.broadcast %c0_i8_5 : i8 to vector<1x384xi8>
    %8 = arith.cmpi ne, %6, %7 : vector<1x384xi8>
    %9 = tpu.bitcast %2 : vector<128x384xi8> -> vector<32x384xi32>
    %c382_i32 = arith.constant 382 : i32
    %10 = tpu.dynamic_rotate %9 by %c382_i32 dim 1 : vector<32x384xi32>, i32 -> vector<32x384xi32>
    %c2_i32 = arith.constant 2 : i32
    %11 = tpu.dynamic_rotate %9 by %c2_i32 dim 1 : vector<32x384xi32>, i32 -> vector<32x384xi32>
    %12 = vector.shape_cast %8 : vector<1x384xi1> to vector<1x384xi1>
    %13 = vector.broadcast %12 : vector<1x384xi1> to vector<32x384xi1>
    %14 = arith.select %13, %11, %9 : vector<32x384xi1>, vector<32x384xi32>
    %15 = vector.shape_cast %5 : vector<1x384xi1> to vector<1x384xi1>
    %16 = vector.broadcast %15 : vector<1x384xi1> to vector<32x384xi1>
    %17 = arith.select %16, %10, %14 : vector<32x384xi1>, vector<32x384xi32>
    %18 = tpu.bitcast %17 : vector<32x384xi32> -> vector<128x384xi8>
    %c0_6 = arith.constant 0 : index
    %c0_7 = arith.constant 0 : index
    %19 = vector.load %arg4[%c0_6, %c0_7] : memref<128x384xi8, #tpu.memory_space<vmem>>, vector<128x384xi8>
    tpu.vector_store %arg4[%c0_6, %c0_7], %18 {strides = array<i32>} : memref<128x384xi8, #tpu.memory_space<vmem>>, vector<128x384xi8>,
    return
  }
  func.func @transform_0(%arg0: i32) -> (i32, i32) {
    %c0_i32 = arith.constant 0 : i32
    %c0_i32_0 = arith.constant 0 : i32
    %c0_i32_1 = arith.constant 0 : i32
    return %c0_i32, %c0_i32_0 : i32, i32
  }
  func.func @transform_1(%arg0: i32) -> (i32, i32) {
    %c0_i32 = arith.constant 0 : i32
    %c0_i32_0 = arith.constant 0 : i32
    %c0_i32_1 = arith.constant 0 : i32
    return %c0_i32, %c0_i32_0 : i32, i32
  }
  func.func @transform_2(%arg0: i32) -> (i32, i32) {
    %c0_i32 = arith.constant 0 : i32
    %c0_i32_0 = arith.constant 0 : i32
    return %arg0, %c0_i32 : i32, i32
  }
  func.func @transform_3(%arg0: i32) -> (i32, i32) {
    %c0_i32 = arith.constant 0 : i32
    %c0_i32_0 = arith.constant 0 : i32
    return %arg0, %c0_i32 : i32, i32
  }
}

</mosaic_0001>

<llo_original>
// kernel: tpu_custom_call.1
$region0: #{tpu_custom_call.1}
  #allocation0 [shape = 'u32[]', space=smem, size = 0x4, offset = 0x4, fixed_abs, tag = 'smem constant byte address 0x4 - core index']
  #allocation1 [shape = 'u32[144,128]{1,0:T(1,128)}', space=vmem, size = 0x12000, scoped, tag = 'internal scratch']
  %s0 = inlined_call_operand.hbm [shape: u8[1,384], index: 0, kind: input, shape index: {}]
  %s1 = inlined_call_operand.hbm [shape: u8[1,384], index: 1, kind: input, shape index: {}]
  %s2 = inlined_call_operand.hbm [shape: f32[128,384], index: 2, kind: input, shape index: {}]
  %s3 = inlined_call_operand.hbm [shape: u8[128,384], index: 3, kind: output, shape index: {}]
  %s4 = sld [smem:[#allocation0]]
  $region34: #{tpu_custom_call.1} parent=0
    _
  %s6 = ssub.s32 1, %s4
  %s7 = scalar_select 0, %s6, %s4
  $region1: #{tpu_custom_call.1} parent=0
    #allocation2 [shape = 'u8[1536]{0}', space=vmem, size = 0x800, scoped, tag = 'input window, operand 0, single buffered']
    #allocation3 [shape = 's32[1]{0}', space=sflag, size = 0x4, scoped, tag = 'scoped memory for tpu_custom_call.1']
    #allocation4 [shape = 's32[1]{0}', space=sflag, size = 0x4, scoped, tag = 'scoped memory for tpu_custom_call.1']
    #allocation5 [shape = 'u8[1536]{0}', space=vmem, size = 0x800, scoped, tag = 'input window, operand 1, single buffered']
    #allocation6 [shape = 's32[1]{0}', space=sflag, size = 0x4, scoped, tag = 'scoped memory for tpu_custom_call.1']
    #allocation7 [shape = 'u8[196608]{0}', space=vmem, size = 0x30000, scoped, tag = 'input window, operand 2, single buffered']
    #allocation8 [shape = 'u8[49152]{0}', space=vmem, size = 0xc000, scoped, tag = 'output window, operand 0, single buffered']
    %8 = vsyncpa [#allocation3], 0
    %9 = vsyncpa [#allocation6], 0
    %10 = vsyncpa [#allocation4], 0
    // Predicated region
    $region2: #{tpu_custom_call.1} parent=1 // pred_check
      _
    $region3: #{tpu_custom_call.1} parent=1 // pred_check_branch
      %12 = sbr.rel (0) target = $region5
    $region4: #{tpu_custom_call.1} parent=1 // pred_region
      %s14 = ssub.s32 48, 48
      %15 = vsyncadd [#allocation3], %s14
      %s17 = sshll.u32 [#allocation2], 4
      %s18 = int_to_ptr.vmem [resolvable:$true] %s17
      %20 = dma.hbm_to_vmem [thread:$0]  %s0, 48, %s18, [#allocation3]
    $region5: #{tpu_custom_call.1} parent=1 // pred_fallthru
      _
    // Predicated region
    $region6: #{tpu_custom_call.1} parent=1 // pred_check
      _
    $region7: #{tpu_custom_call.1} parent=1 // pred_check_branch
      %22 = sbr.rel (0) target = $region9
    $region8: #{tpu_custom_call.1} parent=1 // pred_region
      %s24 = ssub.s32 48, 48
      %25 = vsyncadd [#allocation6], %s24
      %s27 = sshll.u32 [#allocation5], 4
      %s28 = int_to_ptr.vmem [resolvable:$true] %s27
      %30 = dma.hbm_to_vmem [thread:$0]  %s1, 48, %s28, [#allocation6]
    $region9: #{tpu_custom_call.1} parent=1 // pred_fallthru
      _
    // Predicated region
    $region10: #{tpu_custom_call.1} parent=1 // pred_check
      _
    $region11: #{tpu_custom_call.1} parent=1 // pred_check_branch
      %32 = sbr.rel (0) target = $region13
    $region12: #{tpu_custom_call.1} parent=1 // pred_region
      %s34 = ssub.s32 6144, 6144
      %35 = vsyncadd [#allocation6], %s34
      %s36 = sshll.u32 [#allocation7], 4
      %s37 = int_to_ptr.vmem [resolvable:$true] %s36
      %42 = dma.hbm_to_vmem [thread:$0]  %s2, 6144, %s37, [#allocation6], 384, 384, 24
    $region13: #{tpu_custom_call.1} parent=1 // pred_fallthru
      _
    // Predicated region
    $region14: #{tpu_custom_call.1} parent=1 // pred_check
      _
    $region15: #{tpu_custom_call.1} parent=1 // pred_check_branch
      %44 = sbr.rel (0) target = $region17
    $region16: #{tpu_custom_call.1} parent=1 // pred_region
      %45 = dma.done [#allocation3], 48
    $region17: #{tpu_custom_call.1} parent=1 // pred_fallthru
      _
    // Predicated region
    $region18: #{tpu_custom_call.1} parent=1 // pred_check
      _
    $region19: #{tpu_custom_call.1} parent=1 // pred_check_branch
      %47 = sbr.rel (0) target = $region21
    $region20: #{tpu_custom_call.1} parent=1 // pred_region
      %48 = dma.done [#allocation6], 48
    $region21: #{tpu_custom_call.1} parent=1 // pred_fallthru
      _
    // Predicated region
    $region22: #{tpu_custom_call.1} parent=1 // pred_check
      _
    $region23: #{tpu_custom_call.1} parent=1 // pred_check_branch
      %50 = sbr.rel (0) target = $region25
    $region24: #{tpu_custom_call.1} parent=1 // pred_region
      %51 = dma.done [#allocation6], 6144
    $region25: #{tpu_custom_call.1} parent=1 // pred_fallthru
      _
    %v54 = vld [vmem:[#allocation7] sm:$0xff]
    %v55 = vld [vmem:[#allocation7 + $0x8] sm:$0xff]
    %v56 = vld [vmem:[#allocation7 + $0x10] sm:$0xff]
    %v57 = vld [vmem:[#allocation7 + $0x18] sm:$0xff]
    %v58 = vld [vmem:[#allocation7 + $0x20] sm:$0xff]
    %v59 = vld [vmem:[#allocation7 + $0x28] sm:$0xff]
    %v60 = vld [vmem:[#allocation7 + $0x30] sm:$0xff]
    %v61 = vld [vmem:[#allocation7 + $0x38] sm:$0xff]
    %v62 = vld [vmem:[#allocation7 + $0x40] sm:$0xff]
    %v63 = vld [vmem:[#allocation7 + $0x48] sm:$0xff]
    %v64 = vld [vmem:[#allocation7 + $0x50] sm:$0xff]
    %v65 = vld [vmem:[#allocation7 + $0x58] sm:$0xff]
    %v66 = vld [vmem:[#allocation7 + $0x60] sm:$0xff]
    %v67 = vld [vmem:[#allocation7 + $0x68] sm:$0xff]
    %v68 = vld [vmem:[#allocation7 + $0x70] sm:$0xff]
    %v69 = vld [vmem:[#allocation7 + $0x78] sm:$0xff]
    %v70 = vld [vmem:[#allocation7 + $0x80] sm:$0xff]
    %v71 = vld [vmem:[#allocation7 + $0x88] sm:$0xff]
    %v72 = vld [vmem:[#allocation7 + $0x90] sm:$0xff]
    %v73 = vld [vmem:[#allocation7 + $0x98] sm:$0xff]
    %v74 = vld [vmem:[#allocation7 + $0xa0] sm:$0xff]
    %v75 = vld [vmem:[#allocation7 + $0xa8] sm:$0xff]
    %v76 = vld [vmem:[#allocation7 + $0xb0] sm:$0xff]
    %v77 = vld [vmem:[#allocation7 + $0xb8] sm:$0xff]
    %v78 = vld [vmem:[#allocation7 + $0xc0] sm:$0xff]
    %v79 = vld [vmem:[#allocation7 + $0xc8] sm:$0xff]
    %v80 = vld [vmem:[#allocation7 + $0xd0] sm:$0xff]
    %v81 = vld [vmem:[#allocation7 + $0xd8] sm:$0xff]
    %v82 = vld [vmem:[#allocation7 + $0xe0] sm:$0xff]
    %v83 = vld [vmem:[#allocation7 + $0xe8] sm:$0xff]
    %v84 = vld [vmem:[#allocation7 + $0xf0] sm:$0xff]
    %v85 = vld [vmem:[#allocation7 + $0xf8] sm:$0xff]
    %v86 = vld [vmem:[#allocation7 + $0x100] sm:$0xff]
    %v87 = vld [vmem:[#allocation7 + $0x108] sm:$0xff]
    %v88 = vld [vmem:[#allocation7 + $0x110] sm:$0xff]
    %v89 = vld [vmem:[#allocation7 + $0x118] sm:$0xff]
    %v90 = vld [vmem:[#allocation7 + $0x120] sm:$0xff]
    %v91 = vld [vmem:[#allocation7 + $0x128] sm:$0xff]
    %v92 = vld [vmem:[#allocation7 + $0x130] sm:$0xff]
    %v93 = vld [vmem:[#allocation7 + $0x138] sm:$0xff]
    %v94 = vld [vmem:[#allocation7 + $0x140] sm:$0xff]
    %v95 = vld [vmem:[#allocation7 + $0x148] sm:$0xff]
    %v96 = vld [vmem:[#allocation7 + $0x150] sm:$0xff]
    %v97 = vld [vmem:[#allocation7 + $0x158] sm:$0xff]
    %v98 = vld [vmem:[#allocation7 + $0x160] sm:$0xff]
    %v99 = vld [vmem:[#allocation7 + $0x168] sm:$0xff]
    %v100 = vld [vmem:[#allocation7 + $0x170] sm:$0xff]
    %v101 = vld [vmem:[#allocation7 + $0x178] sm:$0xff]
    %v102 = vcvt.f32.s32.to.zero.pseudo %v54
    %v103 = vcvt.f32.s32.to.zero.pseudo %v55
    %v104 = vcvt.f32.s32.to.zero.pseudo %v56
    %v105 = vcvt.f32.s32.to.zero.pseudo %v57
    %v106 = vcvt.f32.s32.to.zero.pseudo %v58
    %v107 = vcvt.f32.s32.to.zero.pseudo %v59
    %v108 = vcvt.f32.s32.to.zero.pseudo %v60
    %v109 = vcvt.f32.s32.to.zero.pseudo %v61
    %v110 = vcvt.f32.s32.to.zero.pseudo %v62
    %v111 = vcvt.f32.s32.to.zero.pseudo %v63
    %v112 = vcvt.f32.s32.to.zero.pseudo %v64
    %v113 = vcvt.f32.s32.to.zero.pseudo %v65
    %v114 = vcvt.f32.s32.to.zero.pseudo %v66
    %v115 = vcvt.f32.s32.to.zero.pseudo %v67
    %v116 = vcvt.f32.s32.to.zero.pseudo %v68
    %v117 = vcvt.f32.s32.to.zero.pseudo %v69
    %v118 = vcvt.f32.s32.to.zero.pseudo %v70
    %v119 = vcvt.f32.s32.to.zero.pseudo %v71
    %v120 = vcvt.f32.s32.to.zero.pseudo %v72
    %v121 = vcvt.f32.s32.to.zero.pseudo %v73
    %v122 = vcvt.f32.s32.to.zero.pseudo %v74
    %v123 = vcvt.f32.s32.to.zero.pseudo %v75
    %v124 = vcvt.f32.s32.to.zero.pseudo %v76
    %v125 = vcvt.f32.s32.to.zero.pseudo %v77
    %v126 = vcvt.f32.s32.to.zero.pseudo %v78
    %v127 = vcvt.f32.s32.to.zero.pseudo %v79
    %v128 = vcvt.f32.s32.to.zero.pseudo %v80
    %v129 = vcvt.f32.s32.to.zero.pseudo %v81
    %v130 = vcvt.f32.s32.to.zero.pseudo %v82
    %v131 = vcvt.f32.s32.to.zero.pseudo %v83
    %v132 = vcvt.f32.s32.to.zero.pseudo %v84
    %v133 = vcvt.f32.s32.to.zero.pseudo %v85
    %v134 = vcvt.f32.s32.to.zero.pseudo %v86
    %v135 = vcvt.f32.s32.to.zero.pseudo %v87
    %v136 = vcvt.f32.s32.to.zero.pseudo %v88
    %v137 = vcvt.f32.s32.to.zero.pseudo %v89
    %v138 = vcvt.f32.s32.to.zero.pseudo %v90
    %v139 = vcvt.f32.s32.to.zero.pseudo %v91
    %v140 = vcvt.f32.s32.to.zero.pseudo %v92
    %v141 = vcvt.f32.s32.to.zero.pseudo %v93
    %v142 = vcvt.f32.s32.to.zero.pseudo %v94
    %v143 = vcvt.f32.s32.to.zero.pseudo %v95
    %v144 = vcvt.f32.s32.to.zero.pseudo %v96
    %v145 = vcvt.f32.s32.to.zero.pseudo %v97
    %v146 = vcvt.f32.s32.to.zero.pseudo %v98
    %v147 = vcvt.f32.s32.to.zero.pseudo %v99
    %v148 = vcvt.f32.s32.to.zero.pseudo %v100
    %v149 = vcvt.f32.s32.to.zero.pseudo %v101
    %v150 = vpack.c.b16 %v105, %v102
    %v151 = vpack.c.b16 %v111, %v108
    %v152 = vpack.c.b8 %v151, %v150
    %v153 = vpack.c.b16 %v106, %v103
    %v154 = vpack.c.b16 %v112, %v109
    %v155 = vpack.c.b8 %v154, %v153
    %v156 = vpack.c.b16 %v107, %v104
    %v157 = vpack.c.b16 %v113, %v110
    %v158 = vpack.c.b8 %v157, %v156
    %v159 = vpack.c.b16 %v117, %v114
    %v160 = vpack.c.b16 %v123, %v120
    %v161 = vpack.c.b8 %v160, %v159
    %v162 = vpack.c.b16 %v118, %v115
    %v163 = vpack.c.b16 %v124, %v121
    %v164 = vpack.c.b8 %v163, %v162
    %v165 = vpack.c.b16 %v119, %v116
    %v166 = vpack.c.b16 %v125, %v122
    %v167 = vpack.c.b8 %v166, %v165
    %v168 = vpack.c.b16 %v129, %v126
    %v169 = vpack.c.b16 %v135, %v132
    %v170 = vpack.c.b8 %v169, %v168
    %v171 = vpack.c.b16 %v130, %v127
    %v172 = vpack.c.b16 %v136, %v133
    %v173 = vpack.c.b8 %v172, %v171
    %v174 = vpack.c.b16 %v131, %v128
    %v175 = vpack.c.b16 %v137, %v134
    %v176 = vpack.c.b8 %v175, %v174
    %v177 = vpack.c.b16 %v141, %v138
    %v178 = vpack.c.b16 %v147, %v144
    %v179 = vpack.c.b8 %v178, %v177
    %v180 = vpack.c.b16 %v142, %v139
    %v181 = vpack.c.b16 %v148, %v145
    %v182 = vpack.c.b8 %v181, %v180
    %v183 = vpack.c.b16 %v143, %v140
    %v184 = vpack.c.b16 %v149, %v146
    %v185 = vpack.c.b8 %v184, %v183
    %v186 = vld [vmem:[#allocation2] sm:$0x7]
    %vm187 = vnez %v186
    %v188 = vld [vmem:[#allocation5] sm:$0x7]
    %vm189 = vnez %v188
    %202 = vrot.lane.b32.xlu0 %v152, 126
    %v203 = vpop.permute.xlu0 %202
    %204 = vrot.lane.b32.xlu0 %v161, 126
    %v205 = vpop.permute.xlu0 %204
    %206 = vrot.lane.b32.xlu0 %v170, 126
    %v207 = vpop.permute.xlu0 %206
    %208 = vrot.lane.b32.xlu0 %v179, 126
    %v209 = vpop.permute.xlu0 %208
    %210 = vrot.lane.b32.xlu0 %v155, 126
    %v211 = vpop.permute.xlu0 %210
    %212 = vrot.lane.b32.xlu0 %v164, 126
    %v213 = vpop.permute.xlu0 %212
    %214 = vrot.lane.b32.xlu0 %v173, 126
    %v215 = vpop.permute.xlu0 %214
    %216 = vrot.lane.b32.xlu0 %v182, 126
    %v217 = vpop.permute.xlu0 %216
    %218 = vrot.lane.b32.xlu0 %v158, 126
    %v219 = vpop.permute.xlu0 %218
    %220 = vrot.lane.b32.xlu0 %v167, 126
    %v221 = vpop.permute.xlu0 %220
    %222 = vrot.lane.b32.xlu0 %v176, 126
    %v223 = vpop.permute.xlu0 %222
    %224 = vrot.lane.b32.xlu0 %v185, 126
    %v225 = vpop.permute.xlu0 %224
    %v226 = vlaneseq
    %v227 = vand.u32 %v226, 127
    %vm228 = vcmp.lt.s32.totalorder %v227, 126
    %v229 = vsel %vm228, %v211, %v219
    %v230 = vsel %vm228, %v213, %v221
    %v231 = vsel %vm228, %v215, %v223
    %v232 = vsel %vm228, %v217, %v225
    %v233 = vsel %vm228, %v203, %v211
    %v234 = vsel %vm228, %v205, %v213
    %v235 = vsel %vm228, %v207, %v215
    %v236 = vsel %vm228, %v209, %v217
    %v237 = vsel %vm228, %v219, %v203
    %v238 = vsel %vm228, %v221, %v205
    %v239 = vsel %vm228, %v223, %v207
    %v240 = vsel %vm228, %v225, %v209
    %241 = vrot.lane.b32.xlu0 %v152, 2
    %v242 = vpop.permute.xlu0 %241
    %243 = vrot.lane.b32.xlu0 %v161, 2
    %v244 = vpop.permute.xlu0 %243
    %245 = vrot.lane.b32.xlu0 %v170, 2
    %v246 = vpop.permute.xlu0 %245
    %247 = vrot.lane.b32.xlu0 %v179, 2
    %v248 = vpop.permute.xlu0 %247
    %249 = vrot.lane.b32.xlu0 %v155, 2
    %v250 = vpop.permute.xlu0 %249
    %251 = vrot.lane.b32.xlu0 %v164, 2
    %v252 = vpop.permute.xlu0 %251
    %253 = vrot.lane.b32.xlu0 %v173, 2
    %v254 = vpop.permute.xlu0 %253
    %255 = vrot.lane.b32.xlu0 %v182, 2
    %v256 = vpop.permute.xlu0 %255
    %257 = vrot.lane.b32.xlu0 %v158, 2
    %v258 = vpop.permute.xlu0 %257
    %259 = vrot.lane.b32.xlu0 %v167, 2
    %v260 = vpop.permute.xlu0 %259
    %261 = vrot.lane.b32.xlu0 %v176, 2
    %v262 = vpop.permute.xlu0 %261
    %263 = vrot.lane.b32.xlu0 %v185, 2
    %v264 = vpop.permute.xlu0 %263
    %vm265 = vcmp.lt.s32.totalorder %v227, 2
    %v266 = vsel %vm265, %v250, %v258
    %v267 = vsel %vm265, %v252, %v260
    %v268 = vsel %vm265, %v254, %v262
    %v269 = vsel %vm265, %v256, %v264
    %v270 = vsel %vm265, %v242, %v250
    %v271 = vsel %vm265, %v244, %v252
    %v272 = vsel %vm265, %v246, %v254
    %v273 = vsel %vm265, %v248, %v256
    %v274 = vsel %vm265, %v258, %v242
    %v275 = vsel %vm265, %v260, %v244
    %v276 = vsel %vm265, %v262, %v246
    %v277 = vsel %vm265, %v264, %v248
    %v278 = vsel %vm189, 16843009, 0
    %v279 = vunpack.c.0.s8 %v278
    %v280 = vunpack.c.1.s8 %v278
    %vm281 = vcmp.ne.s32.totalorder %v279, 0
    %vm282 = vcmp.ne.s32.totalorder %v280, 0
    %v283 = vsel %vm281, 1, 0
    %v284 = vsel %vm282, 1, 0
    %v285 = vlaneseq
    %v286 = vshrl.u32 %v285, 7
    %v287 = vsub.s32 0, %v286
    %v288 = vrot.slane %v283, %v287
    %v289 = vlaneseq
    %v290 = vshrl.u32 %v289, 7
    %v291 = vsub.s32 4, %v290
    %v292 = vrot.slane %v283, %v291
    %v293 = vlaneseq
    %v294 = vshrl.u32 %v293, 7
    %v295 = vsub.s32 0, %v294
    %v296 = vrot.slane %v284, %v295
    %vm297 = vcmp.ne.s32.totalorder %v288, 0
    %vm298 = vcmp.ne.s32.totalorder %v292, 0
    %vm299 = vcmp.ne.s32.totalorder %v296, 0
    %v300 = vsel %vm297, 1, 0
    %v301 = vsel %vm298, 1, 0
    %v302 = vsel %vm299, 1, 0
    %v303 = vlaneseq
    %v304 = vshrl.u32 %v303, 7
    %v305 = vsub.s32 0, %v304
    %v306 = vrot.slane %v300, %v305
    %v307 = vlaneseq
    %v308 = vshrl.u32 %v307, 7
    %v309 = vsub.s32 0, %v308
    %v310 = vrot.slane %v301, %v309
    %v311 = vlaneseq
    %v312 = vshrl.u32 %v311, 7
    %v313 = vsub.s32 0, %v312
    %v314 = vrot.slane %v302, %v313
    %vm315 = vcmp.eq.s32.totalorder %v306, 1
    %vm316 = vcmp.eq.s32.totalorder %v310, 1
    %vm317 = vcmp.eq.s32.totalorder %v314, 1
    %v318 = vsel %vm315, %v274, %v152
    %v319 = vsel %vm316, %v270, %v155
    %v320 = vsel %vm317, %v266, %v158
    %v321 = vsel %vm315, %v275, %v161
    %v322 = vsel %vm316, %v271, %v164
    %v323 = vsel %vm317, %v267, %v167
    %v324 = vsel %vm315, %v276, %v170
    %v325 = vsel %vm316, %v272, %v173
    %v326 = vsel %vm317, %v268, %v176
    %v327 = vsel %vm315, %v277, %v179
    %v328 = vsel %vm316, %v273, %v182
    %v329 = vsel %vm317, %v269, %v185
    %v330 = vsel %vm187, 16843009, 0
    %v331 = vunpack.c.0.s8 %v330
    %v332 = vunpack.c.1.s8 %v330
    %vm333 = vcmp.ne.s32.totalorder %v331, 0
    %vm334 = vcmp.ne.s32.totalorder %v332, 0
    %v335 = vsel %vm333, 1, 0
    %v336 = vsel %vm334, 1, 0
    %v337 = vlaneseq
    %v338 = vshrl.u32 %v337, 7
    %v339 = vsub.s32 0, %v338
    %v340 = vrot.slane %v335, %v339
    %v341 = vlaneseq
    %v342 = vshrl.u32 %v341, 7
    %v343 = vsub.s32 4, %v342
    %v344 = vrot.slane %v335, %v343
    %v345 = vlaneseq
    %v346 = vshrl.u32 %v345, 7
    %v347 = vsub.s32 0, %v346
    %v348 = vrot.slane %v336, %v347
    %vm349 = vcmp.ne.s32.totalorder %v340, 0
    %vm350 = vcmp.ne.s32.totalorder %v344, 0
    %vm351 = vcmp.ne.s32.totalorder %v348, 0
    %v352 = vsel %vm349, 1, 0
    %v353 = vsel %vm350, 1, 0
    %v354 = vsel %vm351, 1, 0
    %v355 = vlaneseq
    %v356 = vshrl.u32 %v355, 7
    %v357 = vsub.s32 0, %v356
    %v358 = vrot.slane %v352, %v357
    %v359 = vlaneseq
    %v360 = vshrl.u32 %v359, 7
    %v361 = vsub.s32 0, %v360
    %v362 = vrot.slane %v353, %v361
    %v363 = vlaneseq
    %v364 = vshrl.u32 %v363, 7
    %v365 = vsub.s32 0, %v364
    %v366 = vrot.slane %v354, %v365
    %vm367 = vcmp.eq.s32.totalorder %v358, 1
    %vm368 = vcmp.eq.s32.totalorder %v362, 1
    %vm369 = vcmp.eq.s32.totalorder %v366, 1
    %v370 = vsel %vm367, %v233, %v318
    %v371 = vsel %vm368, %v229, %v319
    %v372 = vsel %vm369, %v237, %v320
    %v373 = vsel %vm367, %v234, %v321
    %v374 = vsel %vm368, %v230, %v322
    %v375 = vsel %vm369, %v238, %v323
    %v376 = vsel %vm367, %v235, %v324
    %v377 = vsel %vm368, %v231, %v325
    %v378 = vsel %vm369, %v239, %v326
    %v379 = vsel %vm367, %v236, %v327
    %v380 = vsel %vm368, %v232, %v328
    %v381 = vsel %vm369, %v240, %v329
    %394 = vst [vmem:[#allocation8] sm:$0xff] %v370
    %395 = vst [vmem:[#allocation8 + $0x8] sm:$0xff] %v371
    %396 = vst [vmem:[#allocation8 + $0x10] sm:$0xff] %v372
    %397 = vst [vmem:[#allocation8 + $0x18] sm:$0xff] %v373
    %398 = vst [vmem:[#allocation8 + $0x20] sm:$0xff] %v374
    %399 = vst [vmem:[#allocation8 + $0x28] sm:$0xff] %v375
    %400 = vst [vmem:[#allocation8 + $0x30] sm:$0xff] %v376
    %401 = vst [vmem:[#allocation8 + $0x38] sm:$0xff] %v377
    %402 = vst [vmem:[#allocation8 + $0x40] sm:$0xff] %v378
    %403 = vst [vmem:[#allocation8 + $0x48] sm:$0xff] %v379
    %404 = vst [vmem:[#allocation8 + $0x50] sm:$0xff] %v380
    %405 = vst [vmem:[#allocation8 + $0x58] sm:$0xff] %v381
    // Predicated region
    $region26: #{tpu_custom_call.1} parent=1 // pred_check
      _
    $region27: #{tpu_custom_call.1} parent=1 // pred_check_branch
      %407 = sbr.rel (0) target = $region29
    $region28: #{tpu_custom_call.1} parent=1 // pred_region
      %s409 = ssub.s32 1536, 1536
      %410 = vsyncadd [#allocation4], %s409
      %s411 = sshll.u32 [#allocation8], 4
      %s412 = int_to_ptr.vmem [resolvable:$true] %s411
      %417 = dma.vmem_to_hbm [thread:$0]  %s412, 1536, %s3, [#allocation4], 384, 384, 24
    $region29: #{tpu_custom_call.1} parent=1 // pred_fallthru
      _
    // Predicated region
    $region30: #{tpu_custom_call.1} parent=1 // pred_check
      _
    $region31: #{tpu_custom_call.1} parent=1 // pred_check_branch
      %419 = sbr.rel (0) target = $region33
    $region32: #{tpu_custom_call.1} parent=1 // pred_region
      %420 = dma.done [#allocation4], 1536
    $region33: #{tpu_custom_call.1} parent=1 // pred_fallthru
      _
    %421 = vsyncpa [#allocation3], 1
    %422 = vsyncpa [#allocation6], 1
    %423 = vsyncpa [#allocation4], 1

</llo_original>
